<compile_context>
chip_gen: v7x
topology: tpu7x:2x2x1
jax: 0.10.0
libtpu: 0.0.40
codegen_flags: <defaults>
</compile_context>

<pallas_src>
import functools

import jax
import jax.numpy as jnp
from jax.experimental import pallas as pl
from jax.experimental.pallas import tpu as pltpu


def _round_up(n, m):
    return ((n + m - 1) // m) * m


def _head_kernel(x_ref, w1_ref, b1_ref, w2_ref, b2_ref, o_ref):
    # dropout -> identity (eval mode)
    x = x_ref[...]                                   # native dtype (f32/bf16)

    # dense: x @ W1 + b1   (W1 pre-transposed to [H, H]); f32 accumulation on MXU.
    h = jnp.dot(x, w1_ref[...], preferred_element_type=jnp.float32)
    h = h + b1_ref[...]                              # bias add in f32

    # dropout -> identity (eval mode)

    # out_proj: h @ W2 + b2  (W2 pre-transposed + lane-padded to [H, Lp]).
    h = h.astype(x.dtype)                            # keep MXU inputs native dtype
    y = jnp.dot(h, w2_ref[...], preferred_element_type=jnp.float32)
    y = y + b2_ref[...]

    o_ref[...] = y.astype(o_ref.dtype)


def prepare_head_params(w_dense, b_dense, w_out, b_out, *, param_dtype=None):
    """One-time parameter prep (do NOT call per forward pass).

    w_dense: [H, H] (PyTorch [out, in]), b_dense: [H]
    w_out:   [L, H] (PyTorch [out, in]), b_out:   [L]
    Returns (w1_t [H,H], b1 [1,H] f32, w2_p [H,Lp], b2_p [1,Lp] f32, L).
    """
    H = w_dense.shape[0]
    L = w_out.shape[0]
    Lp = _round_up(L, 128)                           # lane-dense output width

    if param_dtype is None:
        param_dtype = w_dense.dtype

    w1_t = jnp.transpose(w_dense).astype(param_dtype)            # [H, H]
    w2_t = jnp.transpose(w_out).astype(param_dtype)              # [H, L]
    w2_p = jnp.zeros((H, Lp), param_dtype).at[:, :L].set(w2_t)   # [H, Lp]

    b1 = b_dense.astype(jnp.float32).reshape(1, H)
    b2_p = jnp.zeros((1, Lp), jnp.float32).at[0, :L].set(b_out.astype(jnp.float32))
    return w1_t, b1, w2_p, b2_p, L


def roberta_classification_head_prepared(x, w1_t, b1, w2_p, b2_p, num_labels,
                                         *, batch_tile=256):
    """x: [B, H]; params from prepare_head_params(). Returns [B, num_labels]."""
    B, H = x.shape
    Lp = w2_p.shape[1]

    # Batch tiling: TB rows per grid step, pad ragged batch with zero rows.
    TB = min(batch_tile, _round_up(B, 8))
    B_pad = _round_up(B, TB)
    if B_pad != B:
        x = jnp.pad(x, ((0, B_pad - B), (0, 0)))
    grid = (B_pad // TB,)

    itemsize = jnp.dtype(x.dtype).itemsize
    # Working set: double-buffered x/out tiles + resident weights (double-buffered
    # by the pipeline even though they never change) + f32 temps inside the body.
    vmem_bytes = (
        2 * (TB * H + TB * Lp) * itemsize            # x / out tiles (2 bufs each)
        + 2 * (H * H + H * Lp) * itemsize            # W1 / W2
        + 2 * 2 * (H + Lp) * 4                       # b1 / b2 (f32)
        + 2 * (TB * H + TB * Lp) * 4                 # f32 intermediates
    )
    vmem_limit = int(min(max(2 * vmem_bytes, 16 * 1024 * 1024), 64 * 1024 * 1024))

    cost = pl.CostEstimate(
        flops=2 * B_pad * H * (H + Lp),
        transcendentals=0,
        bytes_accessed=itemsize * (B_pad * H + H * H + H * Lp + B_pad * Lp)
        + 4 * 2 * (H + Lp),
    )

    out = pl.pallas_call(
        _head_kernel,
        out_shape=jax.ShapeDtypeStruct((B_pad, Lp), x.dtype),
        grid=grid,
        in_specs=[
            pl.BlockSpec((TB, H), lambda i: (i, 0)),   # activations: batch-tiled
            pl.BlockSpec((H, H), lambda i: (0, 0)),    # W1: resident
            pl.BlockSpec((1, H), lambda i: (0, 0)),    # b1: resident
            pl.BlockSpec((H, Lp), lambda i: (0, 0)),   # W2 (padded): resident
            pl.BlockSpec((1, Lp), lambda i: (0, 0)),   # b2 (padded): resident
        ],
        out_specs=pl.BlockSpec((TB, Lp), lambda i: (i, 0)),
        compiler_params=pltpu.CompilerParams(
            dimension_semantics=("parallel",),
            vmem_limit_bytes=vmem_limit,
        ),
        cost_estimate=cost,
    )(x, w1_t, b1, w2_p, b2_p)

    return out[:B, :num_labels]


@functools.partial(jax.jit, static_argnames=("batch_tile",))
def roberta_classification_head(x, w_dense, b_dense, w_out, b_out, *, batch_tile=256):
    """Convenience wrapper: PyTorch-layout params. Under jit, the transpose/pad
    prep constant-folds; for repeated calls prefer prepare_head_params() once."""
    w1_t, b1, w2_p, b2_p, L = prepare_head_params(w_dense, b_dense, w_out, b_out,
                                                  param_dtype=x.dtype)
    return roberta_classification_head_prepared(x, w1_t, b1, w2_p, b2_p, L,
                                                batch_tile=batch_tile)


def reference(x, w_dense, b_dense, w_out, b_out):
    xf = x.astype(jnp.float32)
    h = xf @ w_dense.T.astype(jnp.float32) + b_dense.astype(jnp.float32)
    y = h @ w_out.T.astype(jnp.float32) + b_out.astype(jnp.float32)
    return y.astype(x.dtype)


if __name__ == "__main__":
    # Small, module-consistent shapes: batch=2, hidden=32, num_labels=4.
    B, H, L = 2, 32, 4
    key = jax.random.PRNGKey(0)
    kx, k1, k2, k3, k4 = jax.random.split(key, 5)

    x = jax.random.normal(kx, (B, H), dtype=jnp.float32)
    # PyTorch nn.Linear weight layout: [out_features, in_features]
    w_dense = jax.random.normal(k1, (H, H), dtype=jnp.float32) * (1.0 / jnp.sqrt(H))
    b_dense = jax.random.normal(k2, (H,), dtype=jnp.float32) * 0.01
    w_out = jax.random.normal(k3, (L, H), dtype=jnp.float32) * (1.0 / jnp.sqrt(H))
    b_out = jax.random.normal(k4, (L,), dtype=jnp.float32) * 0.01

    out = roberta_classification_head(x, w_dense, b_dense, w_out, b_out)
    out = jax.block_until_ready(out)

    ref = reference(x, w_dense, b_dense, w_out, b_out)
    assert out.shape == (B, L), out.shape
    assert jnp.allclose(out, ref, atol=1e-4, rtol=1e-4), (out, ref)

    print("KERNEL_OK")
</pallas_src>

<mosaic_0001>
module attributes {stable_mosaic.version = 11 : i64} {
  func.func @_head_kernel(%arg0: i32, %arg1: memref<8x32xf32, #tpu.memory_space<vmem>>, %arg2: memref<32x32xf32, #tpu.memory_space<vmem>>, %arg3: memref<1x32xf32, #tpu.memory_space<vmem>>, %arg4: memref<32x128xf32, #tpu.memory_space<vmem>>, %arg5: memref<1x128xf32, #tpu.memory_space<vmem>>, %arg6: memref<8x128xf32, #tpu.memory_space<vmem>>) attributes {dimension_semantics = [#tpu.dimension_semantics<parallel>], iteration_bounds = array<i64: 1>, scalar_prefetch = 0 : i64, scratch_operands = 0 : i64, tpu.core_type = #tpu.core_type<tc>, window_params = [{transform_indices = @transform_0, window_bounds = array<i64: 8, 32>}, {pipeline_mode = #tpu.pipeline_mode<synchronous>, transform_indices = @transform_1, window_bounds = array<i64: 32, 32>}, {pipeline_mode = #tpu.pipeline_mode<synchronous>, transform_indices = @transform_2, window_bounds = array<i64: 1, 32>}, {pipeline_mode = #tpu.pipeline_mode<synchronous>, transform_indices = @transform_3, window_bounds = array<i64: 32, 128>}, {pipeline_mode = #tpu.pipeline_mode<synchronous>, transform_indices = @transform_4, window_bounds = array<i64: 1, 128>}, {transform_indices = @transform_5, window_bounds = array<i64: 8, 128>}]} {
    %c0 = arith.constant 0 : index
    %c0_0 = arith.constant 0 : index
    %0 = vector.load %arg1[%c0, %c0_0] : memref<8x32xf32, #tpu.memory_space<vmem>>, vector<8x32xf32>
    %c0_1 = arith.constant 0 : index
    %c0_2 = arith.constant 0 : index
    %1 = vector.load %arg2[%c0_1, %c0_2] : memref<32x32xf32, #tpu.memory_space<vmem>>, vector<32x32xf32>
    %cst = arith.constant dense<0.000000e+00> : vector<8x32xf32>
    %2 = tpu.matmul %0, %1, %cst {dimension_numbers = #tpu.dot_dimension_numbers<[1], [0], [0], [1], [0, 0, 1, 1], [], []>} : vector<8x32xf32>, vector<32x32xf32>, vector<8x32xf32> -> vector<8x32xf32>
    %c0_3 = arith.constant 0 : index
    %c0_4 = arith.constant 0 : index
    %3 = vector.load %arg3[%c0_3, %c0_4] : memref<1x32xf32, #tpu.memory_space<vmem>>, vector<1x32xf32>
    %4 = vector.broadcast %3 : vector<1x32xf32> to vector<8x32xf32>
    %5 = arith.addf %2, %4 : vector<8x32xf32>
    %c0_5 = arith.constant 0 : index
    %c0_6 = arith.constant 0 : index
    %6 = vector.load %arg4[%c0_5, %c0_6] : memref<32x128xf32, #tpu.memory_space<vmem>>, vector<32x128xf32>
    %cst_7 = arith.constant dense<0.000000e+00> : vector<8x128xf32>
    %7 = tpu.matmul %5, %6, %cst_7 {dimension_numbers = #tpu.dot_dimension_numbers<[1], [0], [0], [1], [0, 0, 1, 1], [], []>} : vector<8x32xf32>, vector<32x128xf32>, vector<8x128xf32> -> vector<8x128xf32>
    %c0_8 = arith.constant 0 : index
    %c0_9 = arith.constant 0 : index
    %8 = vector.load %arg5[%c0_8, %c0_9] : memref<1x128xf32, #tpu.memory_space<vmem>>, vector<1x128xf32>
    %9 = vector.broadcast %8 : vector<1x128xf32> to vector<8x128xf32>
    %10 = arith.addf %7, %9 : vector<8x128xf32>
    %c0_10 = arith.constant 0 : index
    %c0_11 = arith.constant 0 : index
    %11 = vector.load %arg6[%c0_10, %c0_11] : memref<8x128xf32, #tpu.memory_space<vmem>>, vector<8x128xf32>
    tpu.vector_store %arg6[%c0_10, %c0_11], %10 {strides = array<i32>} : memref<8x128xf32, #tpu.memory_space<vmem>>, vector<8x128xf32>,
    return
  }
  func.func @transform_0(%arg0: i32) -> (i32, i32) {
    %c0_i32 = arith.constant 0 : i32
    %c0_i32_0 = arith.constant 0 : i32
    return %arg0, %c0_i32 : i32, i32
  }
  func.func @transform_1(%arg0: i32) -> (i32, i32) {
    %c0_i32 = arith.constant 0 : i32
    %c0_i32_0 = arith.constant 0 : i32
    %c0_i32_1 = arith.constant 0 : i32
    return %c0_i32, %c0_i32_0 : i32, i32
  }
  func.func @transform_2(%arg0: i32) -> (i32, i32) {
    %c0_i32 = arith.constant 0 : i32
    %c0_i32_0 = arith.constant 0 : i32
    %c0_i32_1 = arith.constant 0 : i32
    return %c0_i32, %c0_i32_0 : i32, i32
  }
  func.func @transform_3(%arg0: i32) -> (i32, i32) {
    %c0_i32 = arith.constant 0 : i32
    %c0_i32_0 = arith.constant 0 : i32
    %c0_i32_1 = arith.constant 0 : i32
    return %c0_i32, %c0_i32_0 : i32, i32
  }
  func.func @transform_4(%arg0: i32) -> (i32, i32) {
    %c0_i32 = arith.constant 0 : i32
    %c0_i32_0 = arith.constant 0 : i32
    %c0_i32_1 = arith.constant 0 : i32
    return %c0_i32, %c0_i32_0 : i32, i32
  }
  func.func @transform_5(%arg0: i32) -> (i32, i32) {
    %c0_i32 = arith.constant 0 : i32
    %c0_i32_0 = arith.constant 0 : i32
    return %arg0, %c0_i32 : i32, i32
  }
}

</mosaic_0001>

<llo_original>
// kernel: roberta_classification_head.1
$region0: #{roberta_classification_head.1}
  #allocation0 [shape = 'u32[]', space=smem, size = 0x4, offset = 0x4, fixed_abs, tag = 'smem constant byte address 0x4 - core index']
  #allocation1 [shape = 'u32[144,128]{1,0:T(1,128)}', space=vmem, size = 0x12000, scoped, tag = 'internal scratch']
  %s0 = inlined_call_operand.vmem [shape: f32[8,32], index: 0, kind: input, shape index: {}]
  %s1 = inlined_call_operand.vmem [shape: f32[32,32], index: 1, kind: input, shape index: {}]
  %s2 = inlined_call_operand.vmem [shape: f32[1,32], index: 2, kind: input, shape index: {}]
  %s3 = inlined_call_operand.vmem [shape: f32[32,128], index: 3, kind: input, shape index: {}]
  %s4 = inlined_call_operand.vmem [shape: f32[1,128], index: 4, kind: input, shape index: {}]
  %s5 = inlined_call_operand.vmem [shape: f32[8,128], index: 5, kind: output, shape index: {}]
  %s6 = sld [smem:[#allocation0]]
  $region30: #{roberta_classification_head.1} parent=0
    _
  %s8 = ssub.s32 1, %s6
  %s9 = scalar_select 0, %s8, %s6
  // Predicated region
  $region2: #{roberta_classification_head.1} parent=0 // pred_check
    _
  $region3: #{roberta_classification_head.1} parent=0 // pred_check_branch
    %11 = sbr.rel (0) target = $region5
  $region4: #{roberta_classification_head.1} parent=0 // pred_region
    _
  $region5: #{roberta_classification_head.1} parent=0 // pred_fallthru
    _
  // Predicated region
  $region6: #{roberta_classification_head.1} parent=0 // pred_check
    _
  $region7: #{roberta_classification_head.1} parent=0 // pred_check_branch
    %13 = sbr.rel (0) target = $region9
  $region8: #{roberta_classification_head.1} parent=0 // pred_region
    _
  $region9: #{roberta_classification_head.1} parent=0 // pred_fallthru
    _
  // Predicated region
  $region10: #{roberta_classification_head.1} parent=0 // pred_check
    _
  $region11: #{roberta_classification_head.1} parent=0 // pred_check_branch
    %15 = sbr.rel (0) target = $region13
  $region12: #{roberta_classification_head.1} parent=0 // pred_region
    _
  $region13: #{roberta_classification_head.1} parent=0 // pred_fallthru
    _
  // Predicated region
  $region14: #{roberta_classification_head.1} parent=0 // pred_check
    _
  $region15: #{roberta_classification_head.1} parent=0 // pred_check_branch
    %17 = sbr.rel (0) target = $region17
  $region16: #{roberta_classification_head.1} parent=0 // pred_region
    _
  $region17: #{roberta_classification_head.1} parent=0 // pred_fallthru
    _
  // Predicated region
  $region18: #{roberta_classification_head.1} parent=0 // pred_check
    _
  $region19: #{roberta_classification_head.1} parent=0 // pred_check_branch
    %19 = sbr.rel (0) target = $region21
  $region20: #{roberta_classification_head.1} parent=0 // pred_region
    _
  $region21: #{roberta_classification_head.1} parent=0 // pred_fallthru
    _
  %v20 = vld [vmem:[%s0] sm:$0xff]
  %v21 = vld [vmem:[%s1] sm:$0xff]
  %v22 = vld [vmem:[%s1 + $0x8] sm:$0xff]
  %v23 = vld [vmem:[%s1 + $0x10] sm:$0xff]
  %v24 = vld [vmem:[%s1 + $0x18] sm:$0xff]
  %v25 = vld [vmem:[%s2] sm:$0x1]
  %v27 = vlaneseq
  %v28 = vshrl.u32 %v27, 7
  %v29 = vsub.s32 0, %v28
  %v30 = vrot.slane %v25, %v29
  %vm32 = vcmask 261120
  %v34 = vsel %vm32, %v20, 0
  %36 = vmatprep.subr.mxu0 0.0
  %37 = vmatpush1.msra.mxu0 %v21
  %38 = vmatprep.subr.mxu0 0.0
  %39 = vmatpush1.msra.mxu0 %v22
  %40 = vmatprep.subr.mxu0 0.0
  %41 = vmatpush1.msra.mxu0 %v23
  %42 = vmatprep.subr.mxu0 0.0
  %43 = vmatpush1.msra.mxu0 %v24
  %44 = vmatprep.subr.mxu0 0.0
  %45 = vmatpush1.msra.mxu0 0.0
  %46 = vmatprep.subr.mxu0 0.0
  %47 = vmatpush1.msra.mxu0 0.0
  %48 = vmatprep.subr.mxu0 0.0
  %49 = vmatpush1.msra.mxu0 0.0
  %50 = vmatprep.subr.mxu0 0.0
  %51 = vmatpush1.msra.mxu0 0.0
  %52 = vmatprep.subr.mxu0 0.0
  %53 = vmatpush1.msra.mxu0 0.0
  %54 = vmatprep.subr.mxu0 0.0
  %55 = vmatpush1.msra.mxu0 0.0
  %56 = vmatprep.subr.mxu0 0.0
  %57 = vmatpush1.msra.mxu0 0.0
  %58 = vmatprep.subr.mxu0 0.0
  %59 = vmatpush1.msra.mxu0 0.0
  %60 = vmatprep.subr.mxu0 0.0
  %61 = vmatpush1.msra.mxu0 0.0
  %62 = vmatprep.subr.mxu0 0.0
  %63 = vmatpush1.msra.mxu0 0.0
  %64 = vmatprep.subr.mxu0 0.0
  %65 = vmatpush1.msra.mxu0 0.0
  %66 = vmatprep.subr.mxu0 0.0
  %67 = vmatpush1.msra.mxu0 0.0
  %68 = vmatprep.subr.mxu0 0.0
  %69 = vmatpush1.msra.mxu0 0.0
  %70 = vmatprep.subr.mxu0 0.0
  %71 = vmatpush1.msra.mxu0 0.0
  %72 = vmatprep.subr.mxu0 0.0
  %73 = vmatpush1.msra.mxu0 0.0
  %74 = vmatprep.subr.mxu0 0.0
  %75 = vmatpush1.msra.mxu0 0.0
  %76 = vmatprep.subr.mxu0 0.0
  %77 = vmatpush1.msra.mxu0 0.0
  %78 = vmatprep.subr.mxu0 0.0
  %79 = vmatpush1.msra.mxu0 0.0
  %80 = vmatprep.subr.mxu0 0.0
  %81 = vmatpush1.msra.mxu0 0.0
  %82 = vmatprep.subr.mxu0 0.0
  %83 = vmatpush1.msra.mxu0 0.0
  %84 = vmatprep.subr.mxu0 0.0
  %85 = vmatpush1.msra.mxu0 0.0
  %86 = vmatprep.subr.mxu0 0.0
  %87 = vmatpush1.msra.mxu0 0.0
  %88 = vmatprep.subr.mxu0 0.0
  %89 = vmatpush1.msra.mxu0 0.0
  %90 = vmatprep.subr.mxu0 0.0
  %91 = vmatpush1.msra.mxu0 0.0
  %92 = vmatprep.subr.mxu0 0.0
  %93 = vmatpush1.msra.mxu0 0.0
  %94 = vmatprep.subr.mxu0 0.0
  %95 = vmatpush1.msra.mxu0 0.0
  %96 = vmatprep.subr.mxu0 0.0
  %97 = vmatpush1.msra.mxu0 0.0
  %98 = vmatprep.subr.mxu0 0.0
  %99 = vmatpush1.msra.mxu0 0.0
  %100 = vmatprep.mubr.f32.mxu0 0.0
  %101 = vmatmul.mubr.f32.gmra.mrb[0].mxu0 %v34
  %v102 = vpop.f32.mrb[0].mxu0
  %v103 = vadd.f32 %v30, %v102
  %v104 = vpop.f32.mrb[0].mxu0
  %105 = vdwg.mxu0
  %v106 = vld [vmem:[%s3] sm:$0xff]
  %v107 = vld [vmem:[%s3 + $0x8] sm:$0xff]
  %v108 = vld [vmem:[%s3 + $0x10] sm:$0xff]
  %v109 = vld [vmem:[%s3 + $0x18] sm:$0xff]
  %v110 = vld [vmem:[%s4] sm:$0x1]
  %v112 = vlaneseq
  %v113 = vshrl.u32 %v112, 7
  %v114 = vsub.s32 0, %v113
  %v115 = vrot.slane %v110, %v114
  %v118 = vsel %vm32, %v103, 0
  %120 = vmatprep.subr.mxu0 0.0
  %121 = vmatpush1.msra.mxu0 %v106
  %122 = vmatprep.subr.mxu0 0.0
  %123 = vmatpush1.msra.mxu0 %v107
  %124 = vmatprep.subr.mxu0 0.0
  %125 = vmatpush1.msra.mxu0 %v108
  %126 = vmatprep.subr.mxu0 0.0
  %127 = vmatpush1.msra.mxu0 %v109
  %128 = vmatprep.subr.mxu0 0.0
  %129 = vmatpush1.msra.mxu0 0.0
  %130 = vmatprep.subr.mxu0 0.0
  %131 = vmatpush1.msra.mxu0 0.0
  %132 = vmatprep.subr.mxu0 0.0
  %133 = vmatpush1.msra.mxu0 0.0
  %134 = vmatprep.subr.mxu0 0.0
  %135 = vmatpush1.msra.mxu0 0.0
  %136 = vmatprep.subr.mxu0 0.0
  %137 = vmatpush1.msra.mxu0 0.0
  %138 = vmatprep.subr.mxu0 0.0
  %139 = vmatpush1.msra.mxu0 0.0
  %140 = vmatprep.subr.mxu0 0.0
  %141 = vmatpush1.msra.mxu0 0.0
  %142 = vmatprep.subr.mxu0 0.0
  %143 = vmatpush1.msra.mxu0 0.0
  %144 = vmatprep.subr.mxu0 0.0
  %145 = vmatpush1.msra.mxu0 0.0
  %146 = vmatprep.subr.mxu0 0.0
  %147 = vmatpush1.msra.mxu0 0.0
  %148 = vmatprep.subr.mxu0 0.0
  %149 = vmatpush1.msra.mxu0 0.0
  %150 = vmatprep.subr.mxu0 0.0
  %151 = vmatpush1.msra.mxu0 0.0
  %152 = vmatprep.subr.mxu0 0.0
  %153 = vmatpush1.msra.mxu0 0.0
  %154 = vmatprep.subr.mxu0 0.0
  %155 = vmatpush1.msra.mxu0 0.0
  %156 = vmatprep.subr.mxu0 0.0
  %157 = vmatpush1.msra.mxu0 0.0
  %158 = vmatprep.subr.mxu0 0.0
  %159 = vmatpush1.msra.mxu0 0.0
  %160 = vmatprep.subr.mxu0 0.0
  %161 = vmatpush1.msra.mxu0 0.0
  %162 = vmatprep.subr.mxu0 0.0
  %163 = vmatpush1.msra.mxu0 0.0
  %164 = vmatprep.subr.mxu0 0.0
  %165 = vmatpush1.msra.mxu0 0.0
  %166 = vmatprep.subr.mxu0 0.0
  %167 = vmatpush1.msra.mxu0 0.0
  %168 = vmatprep.subr.mxu0 0.0
  %169 = vmatpush1.msra.mxu0 0.0
  %170 = vmatprep.subr.mxu0 0.0
  %171 = vmatpush1.msra.mxu0 0.0
  %172 = vmatprep.subr.mxu0 0.0
  %173 = vmatpush1.msra.mxu0 0.0
  %174 = vmatprep.subr.mxu0 0.0
  %175 = vmatpush1.msra.mxu0 0.0
  %176 = vmatprep.subr.mxu0 0.0
  %177 = vmatpush1.msra.mxu0 0.0
  %178 = vmatprep.subr.mxu0 0.0
  %179 = vmatpush1.msra.mxu0 0.0
  %180 = vmatprep.subr.mxu0 0.0
  %181 = vmatpush1.msra.mxu0 0.0
  %182 = vmatprep.subr.mxu0 0.0
  %183 = vmatpush1.msra.mxu0 0.0
  %184 = vmatprep.mubr.f32.mxu0 0.0
  %185 = vmatmul.mubr.f32.gmra.mrb[0].mxu0 %v118
  %v186 = vpop.f32.mrb[0].mxu0
  %v187 = vadd.f32 %v115, %v186
  %v188 = vpop.f32.mrb[0].mxu0
  %189 = vdwg.mxu0
  %190 = vst [vmem:[%s5] sm:$0xff] %v187
  // Predicated region
  $region22: #{roberta_classification_head.1} parent=0 // pred_check
    _
  $region23: #{roberta_classification_head.1} parent=0 // pred_check_branch
    %192 = sbr.rel (0) target = $region25
  $region24: #{roberta_classification_head.1} parent=0 // pred_region
    _
  $region25: #{roberta_classification_head.1} parent=0 // pred_fallthru
    _
  // Predicated region
  $region26: #{roberta_classification_head.1} parent=0 // pred_check
    _
  $region27: #{roberta_classification_head.1} parent=0 // pred_check_branch
    %194 = sbr.rel (0) target = $region29
  $region28: #{roberta_classification_head.1} parent=0 // pred_region
    _
  $region29: #{roberta_classification_head.1} parent=0 // pred_fallthru
    _

</llo_original>
